<compile_context>
chip_gen: v7x
topology: tpu7x:2x2x1
jax: 0.10.0
libtpu: 0.0.40
codegen_flags: <defaults>
</compile_context>

<pallas_src>
import functools

import jax
import jax.numpy as jnp
from jax.experimental import pallas as pl
from jax.experimental.pallas import tpu as pltpu


def norm_linear_kernel(x_ref, w_ref, out_ref):
    x = x_ref[...]                                   # (tb, D), native dtype
    w = w_ref[...]                                   # (to, D), native dtype

    # F.normalize denominator: clamp(||w_row||, 1e-12). Apply as a column
    # scale on the matmul result instead of materializing normalized W.
    wf = w.astype(jnp.float32)
    inv_norm = pl.reciprocal(
        jnp.maximum(jnp.sqrt(jnp.sum(wf * wf, axis=1)), 1e-12),
        approx=False)                                # (to,)

    # out = x . w^T, contracting on D of both operands (no explicit .T)
    out = jax.lax.dot_general(
        x, w,
        dimension_numbers=(((1,), (1,)), ((), ())),
        preferred_element_type=jnp.float32)          # (tb, to)

    out_ref[...] = (out * inv_norm[None, :]).astype(out_ref.dtype)


def gram_stat_kernel(wj_ref, wi_ref, sep_ref, colmax_ref, acc_ref, *, n_out):
    j = pl.program_id(0)          # column tile (outer)
    i = pl.program_id(1)          # row tile (inner, reduction)
    nj = pl.num_programs(0)
    ni = pl.num_programs(1)

    @pl.when(jnp.logical_and(j == 0, i == 0))
    def _():
        acc_ref[...] = jnp.zeros_like(acc_ref)

    @pl.when(i == 0)
    def _():
        colmax_ref[...] = jnp.full(colmax_ref.shape, -jnp.inf,
                                   colmax_ref.dtype)

    wi = wi_ref[...]                                 # (ti, D)
    wj = wj_ref[...]                                 # (tj, D)
    ti = wi.shape[0]
    tj = wj.shape[0]

    # Gram block G[i_tile, j_tile] = w_i . w_j^T (contract on D; MXU, no .T)
    g = jax.lax.dot_general(
        wi, wj,
        dimension_numbers=(((1,), (1,)), ((), ())),
        preferred_element_type=jnp.float32)          # (ti, tj)

    # diag(G) == row sum-of-squares -> vnorm straight from the row norms.
    wif = wi.astype(jnp.float32)
    inv_vi = pl.reciprocal(
        jnp.sqrt(jnp.sum(wif * wif, axis=1)) + 1e-6, approx=False)  # (ti,)

    # Scale rows now; defer the (strictly positive) column scale past the max.
    scaled = g * inv_vi[:, None]

    # Zero the diagonal (PyTorch mask = 1 - eye semantics).
    row_idx = i * ti + jax.lax.broadcasted_iota(jnp.int32, (ti, tj), 0)
    col_idx = j * tj + jax.lax.broadcasted_iota(jnp.int32, (ti, tj), 1)
    masked = jnp.where(row_idx == col_idx, 0.0, scaled)

    colmax_ref[...] = jnp.maximum(
        colmax_ref[...], jnp.max(masked, axis=0, keepdims=True))    # (1, tj)

    @pl.when(i == ni - 1)
    def _():
        wjf = wj.astype(jnp.float32)
        inv_vj = pl.reciprocal(
            jnp.sqrt(jnp.sum(wjf * wjf, axis=1)) + 1e-6,
            approx=False)                                           # (tj,)
        acc_ref[...] += jnp.sum(colmax_ref[...] * inv_vj[None, :],
                                axis=1, keepdims=True)              # (1, 1)

    @pl.when(jnp.logical_and(j == nj - 1, i == ni - 1))
    def _():
        sep_ref[...] = acc_ref[...] * (1.0 / n_out)


def regular_face_linear(x, weight, *, tb=None, to=None, tij=None):
    B, D = x.shape
    O, D2 = weight.shape
    assert D == D2

    # Tile sizes: lane-dense (128) output columns, 8-sublane batch tiles.
    tb = tb if tb is not None else (8 if B % 8 == 0 else B)
    to = to if to is not None else (128 if O % 128 == 0 else O)
    tij = tij if tij is not None else (128 if O % 128 == 0 else O)
    assert B % tb == 0 and O % to == 0 and O % tij == 0

    # --- output = F.linear(input, F.normalize(weight)) ---
    out = pl.pallas_call(
        norm_linear_kernel,
        out_shape=jax.ShapeDtypeStruct((B, O), x.dtype),
        grid=(B // tb, O // to),
        in_specs=[
            pl.BlockSpec((tb, D), lambda i, j: (i, 0)),
            pl.BlockSpec((to, D), lambda i, j: (j, 0)),
        ],
        out_specs=pl.BlockSpec((tb, to), lambda i, j: (i, j)),
        compiler_params=pltpu.CompilerParams(
            dimension_semantics=("parallel", "parallel")),
        cost_estimate=pl.CostEstimate(
            flops=2 * B * O * D,
            transcendentals=O,
            bytes_accessed=4 * (B * D + O * D + B * O)),
    )(x, weight)

    # --- inter-class separation statistic on the (un-normalized) weight ---
    nj = O // tij
    ni = O // tij
    sep = pl.pallas_call(
        functools.partial(gram_stat_kernel, n_out=O),
        out_shape=jax.ShapeDtypeStruct((1, 1), jnp.float32),
        grid=(nj, ni),
        in_specs=[
            pl.BlockSpec((tij, D), lambda j, i: (j, 0)),   # column tile (j)
            pl.BlockSpec((tij, D), lambda j, i: (i, 0)),   # row tile (i)
        ],
        out_specs=pl.BlockSpec((1, 1), lambda j, i: (0, 0)),
        scratch_shapes=[
            pltpu.VMEM((1, tij), jnp.float32),   # running per-column max
            pltpu.VMEM((1, 1), jnp.float32),     # running sum over columns
        ],
        compiler_params=pltpu.CompilerParams(
            dimension_semantics=("arbitrary", "arbitrary")),
        cost_estimate=pl.CostEstimate(
            flops=2 * O * O * D,
            transcendentals=2 * O,
            bytes_accessed=4 * (2 * O * D + 1)),
    )(weight, weight)

    return out, sep[0, 0]


def _reference(x, weight):
    # pure-JAX reference mirroring the PyTorch module
    hi = jax.lax.Precision.HIGHEST
    w_n = weight / jnp.maximum(
        jnp.linalg.norm(weight, axis=1, keepdims=True), 1e-12)
    output = jnp.dot(x, w_n.T, precision=hi)
    G = jnp.dot(weight, weight.T, precision=hi)
    vnorm = jnp.sqrt(jnp.diag(G)) + 1e-6
    cos = G / vnorm[:, None] / vnorm[None, :]
    mask = 1.0 - jnp.eye(weight.shape[0], dtype=weight.dtype)
    sep = jnp.mean(jnp.max(mask * cos, axis=0))
    return output, sep


if __name__ == "__main__":
    key = jax.random.PRNGKey(0)
    k_x, k_w = jax.random.split(key)

    batch, in_features, out_features = 16, 128, 256

    x = jax.random.normal(k_x, (batch, in_features), dtype=jnp.float32)

    # xavier_uniform_ init for weight (out_features, in_features)
    bound = (6.0 / (in_features + out_features)) ** 0.5
    weight = jax.random.uniform(
        k_w, (out_features, in_features),
        minval=-bound, maxval=bound, dtype=jnp.float32)

    out, sep = regular_face_linear(x, weight)
    jax.block_until_ready((out, sep))

    ref_out, ref_sep = _reference(x, weight)
    assert jnp.allclose(out, ref_out, atol=1e-4, rtol=1e-4), \
        float(jnp.max(jnp.abs(out - ref_out)))
    assert jnp.allclose(sep, ref_sep, atol=1e-4, rtol=1e-4), \
        (float(sep), float(ref_sep))

    print("KERNEL_OK")
</pallas_src>

<mosaic_0001>
module attributes {stable_mosaic.version = 11 : i64} {
  func.func @norm_linear_kernel(%arg0: i32, %arg1: i32, %arg2: memref<8x128xf32, #tpu.memory_space<vmem>>, %arg3: memref<128x128xf32, #tpu.memory_space<vmem>>, %arg4: memref<8x128xf32, #tpu.memory_space<vmem>>) attributes {dimension_semantics = [#tpu.dimension_semantics<parallel>, #tpu.dimension_semantics<parallel>], iteration_bounds = array<i64: 2, 2>, scalar_prefetch = 0 : i64, scratch_operands = 0 : i64, tpu.core_type = #tpu.core_type<tc>, window_params = [{transform_indices = @transform_0, window_bounds = array<i64: 8, 128>}, {transform_indices = @transform_1, window_bounds = array<i64: 128, 128>}, {transform_indices = @transform_2, window_bounds = array<i64: 8, 128>}]} {
    %c0 = arith.constant 0 : index
    %c0_0 = arith.constant 0 : index
    %0 = vector.load %arg2[%c0, %c0_0] : memref<8x128xf32, #tpu.memory_space<vmem>>, vector<8x128xf32>
    %c0_1 = arith.constant 0 : index
    %c0_2 = arith.constant 0 : index
    %1 = vector.load %arg3[%c0_1, %c0_2] : memref<128x128xf32, #tpu.memory_space<vmem>>, vector<128x128xf32>
    %2 = arith.mulf %1, %1 : vector<128x128xf32>
    %cst = arith.constant dense<0.000000e+00> : vector<128xf32>
    %3 = vector.multi_reduction <add>, %2, %cst [1] : vector<128x128xf32> to vector<128xf32>
    %4 = math.sqrt %3 : vector<128xf32>
    %cst_3 = arith.constant 9.99999996E-13 : f32
    %5 = vector.broadcast %cst_3 : f32 to vector<128xf32>
    %6 = arith.maximumf %4, %5 : vector<128xf32>
    %7 = tpu.reciprocal %6 : vector<128xf32> -> vector<128xf32>
    %cst_4 = arith.constant dense<0.000000e+00> : vector<8x128xf32>
    %8 = tpu.matmul %0, %1, %cst_4 {dimension_numbers = #tpu.dot_dimension_numbers<[1], [1], [0], [0], [0, 0, 1, 0], [], []>} : vector<8x128xf32>, vector<128x128xf32>, vector<8x128xf32> -> vector<8x128xf32>
    %9 = vector.shape_cast %7 : vector<128xf32> to vector<1x128xf32>
    %10 = vector.broadcast %9 : vector<1x128xf32> to vector<8x128xf32>
    %11 = arith.mulf %8, %10 : vector<8x128xf32>
    %c0_5 = arith.constant 0 : index
    %c0_6 = arith.constant 0 : index
    %12 = vector.load %arg4[%c0_5, %c0_6] : memref<8x128xf32, #tpu.memory_space<vmem>>, vector<8x128xf32>
    tpu.vector_store %arg4[%c0_5, %c0_6], %11 {strides = array<i32>} : memref<8x128xf32, #tpu.memory_space<vmem>>, vector<8x128xf32>,
    return
  }
  func.func @transform_0(%arg0: i32, %arg1: i32) -> (i32, i32) {
    %c0_i32 = arith.constant 0 : i32
    %c0_i32_0 = arith.constant 0 : i32
    return %arg0, %c0_i32 : i32, i32
  }
  func.func @transform_1(%arg0: i32, %arg1: i32) -> (i32, i32) {
    %c0_i32 = arith.constant 0 : i32
    %c0_i32_0 = arith.constant 0 : i32
    return %arg1, %c0_i32 : i32, i32
  }
  func.func @transform_2(%arg0: i32, %arg1: i32) -> (i32, i32) {
    %c0_i32 = arith.constant 0 : i32
    return %arg0, %arg1 : i32, i32
  }
}

</mosaic_0001>

<llo_original>
// kernel: tpu_custom_call.1
$region0: #{tpu_custom_call.1}
  #allocation0 [shape = 'u32[]', space=smem, size = 0x4, offset = 0x4, fixed_abs, tag = 'smem constant byte address 0x4 - core index']
  #allocation1 [shape = 'u32[144,128]{1,0:T(1,128)}', space=vmem, size = 0x12000, scoped, tag = 'internal scratch']
  %s0 = inlined_call_operand.hbm [shape: f32[16,128], index: 0, kind: input, shape index: {}]
  %s1 = inlined_call_operand.hbm [shape: f32[256,128], index: 1, kind: input, shape index: {}]
  %s2 = inlined_call_operand.hbm [shape: f32[16,256], index: 2, kind: output, shape index: {}]
  %s3 = sld [smem:[#allocation0]]
  $region49: #{tpu_custom_call.1} parent=0
    _
  %s5 = ssub.s32 1, %s3
  %s6 = scalar_select 0, %s5, %s3
  $region1: #{tpu_custom_call.1} parent=0
    #allocation2 [shape = 'u8[8192]{0}', space=vmem, size = 0x2000, scoped, tag = 'input window, operand 0']
    #allocation3 [shape = 's32[2]{0}', space=sflag, size = 0x8, scoped, tag = 'scoped memory for tpu_custom_call.1']
    #allocation4 [shape = 's32[2]{0}', space=sflag, size = 0x8, scoped, tag = 'scoped memory for tpu_custom_call.1']
    #allocation5 [shape = 'u8[131072]{0}', space=vmem, size = 0x20000, scoped, tag = 'input window, operand 1']
    #allocation6 [shape = 's32[2]{0}', space=sflag, size = 0x8, scoped, tag = 'scoped memory for tpu_custom_call.1']
    #allocation7 [shape = 'u8[8192]{0}', space=vmem, size = 0x2000, scoped, tag = 'output window, operand 0']
    %7 = vsyncpa [#allocation3], 0
    %s8 = scalar_lea.sflag [#allocation3], 1
    %9 = vsyncpa %s8, 0
    %10 = vsyncpa [#allocation6], 0
    %s11 = scalar_lea.sflag [#allocation6], 1
    %12 = vsyncpa %s11, 0
    %13 = vsyncpa [#allocation4], 0
    %s14 = scalar_lea.sflag [#allocation4], 1
    %15 = vsyncpa %s14, 0
    loop: start=0, step=1, limit=6
    $region2: #{tpu_custom_call.1} parent=1 // loop_pre_header
      _
    $region3: #{tpu_custom_call.1} parent=1 // loop_header
      %s17 = sphi 0, %s21
      %p18 = scmp.ge.s32.totalorder %s17, 6
      %s24 = sphi 0, %s36
      %s25 = sphi 0, %s32
      %s26 = sphi 0, %s24
      %s27 = sphi 0, %s25
      %s28 = sphi 0, %s26
      %s29 = sphi 0, %s27
      %s39 = sphi 0, %s41
      %s42 = sphi 0, %s39
      %s43 = sphi 0, %s42
      %s59 = sphi 0, %s43
      %s65 = sphi 0, %s67
      %s68 = sphi 0, %s65
      %s69 = sphi 0, %s68
      %s85 = sphi 0, %s69
      %s93 = sphi 0, %s95
      %s96 = sphi 0, %s93
      %s97 = sphi 0, %s96
      %s113 = sphi 0, %s97
    $region4: #{tpu_custom_call.1} parent=1 // loop_header_branch
      %20 = sbr.rel (%p18) target = $region8
    $region5: #{tpu_custom_call.1} parent=1 // loop_body
      %s22 = ssub.s32 %s17, 1
      %s23 = ssub.s32 %s17, 2
      %s30 = sadd.s32 1, %s25
      %p31 = scmp.ge.s32.totalorder %s30, 2
      %s32 = scalar_select %p31, 0, %s30
      %s33 = sadd.s32 1, %s24
      %s34 = scalar_select %p31, %s33, %s24
      %p35 = scmp.ge.s32.totalorder %s34, 2
      %s36 = scalar_select %p35, 0, %s34
      %s37 = ssub.s32 %s24, %s36
      %p38 = scmp.eq.s32.totalorder %s37, 0
      %s40 = sadd.s32 %s39, 1
      %s41 = scalar_select %p38, %s39, %s40
      %p44 = pneg %p38
      %p45 = scmp.eq.s32.totalorder %s17, 3
      %p46 = por %p44, %p45
      %p47 = scmp.ne.s32.totalorder %s39, %s42
      %p48 = scmp.eq.s32.totalorder %s17, 0
      %p49 = por %p47, %p48
      %p50 = scmp.ne.s32.totalorder %s39, %s42
      %p51 = scmp.eq.s32.totalorder %s22, 3
      %p52 = por %p50, %p51
      %p53 = scmp.ne.s32.totalorder %s42, %s43
      %p54 = scmp.eq.s32.totalorder %s22, 0
      %p55 = por %p53, %p54
      %p56 = scmp.ne.s32.totalorder %s42, %s43
      %p57 = scmp.eq.s32.totalorder %s23, 3
      %p58 = por %p56, %p57
      %p60 = scmp.ne.s32.totalorder %s43, %s59
      %p61 = scmp.eq.s32.totalorder %s23, 0
      %p62 = por %p60, %p61
      %s63 = ssub.s32 %s25, %s32
      %p64 = scmp.eq.s32.totalorder %s63, 0
      %s66 = sadd.s32 %s65, 1
      %s67 = scalar_select %p64, %s65, %s66
      %p70 = pneg %p64
      %p71 = scmp.eq.s32.totalorder %s17, 3
      %p72 = por %p70, %p71
      %p73 = scmp.ne.s32.totalorder %s65, %s68
      %p74 = scmp.eq.s32.totalorder %s17, 0
      %p75 = por %p73, %p74
      %p76 = scmp.ne.s32.totalorder %s65, %s68
      %p77 = scmp.eq.s32.totalorder %s22, 3
      %p78 = por %p76, %p77
      %p79 = scmp.ne.s32.totalorder %s68, %s69
      %p80 = scmp.eq.s32.totalorder %s22, 0
      %p81 = por %p79, %p80
      %p82 = scmp.ne.s32.totalorder %s68, %s69
      %p83 = scmp.eq.s32.totalorder %s23, 3
      %p84 = por %p82, %p83
      %p86 = scmp.ne.s32.totalorder %s69, %s85
      %p87 = scmp.eq.s32.totalorder %s23, 0
      %p88 = por %p86, %p87
      %s89 = ssub.s32 %s24, %s36
      %s90 = ssub.s32 %s25, %s32
      %s91 = sor.u32 %s89, %s90
      %p92 = scmp.eq.s32.totalorder %s91, 0
      %s94 = sadd.s32 %s93, 1
      %s95 = scalar_select %p92, %s93, %s94
      %p98 = pneg %p92
      %p99 = scmp.eq.s32.totalorder %s17, 3
      %p100 = por %p98, %p99
      %p101 = scmp.ne.s32.totalorder %s93, %s96
      %p102 = scmp.eq.s32.totalorder %s17, 0
      %p103 = por %p101, %p102
      %p104 = scmp.ne.s32.totalorder %s93, %s96
      %p105 = scmp.eq.s32.totalorder %s22, 3
      %p106 = por %p104, %p105
      %p107 = scmp.ne.s32.totalorder %s96, %s97
      %p108 = scmp.eq.s32.totalorder %s22, 0
      %p109 = por %p107, %p108
      %p110 = scmp.ne.s32.totalorder %s96, %s97
      %p111 = scmp.eq.s32.totalorder %s23, 3
      %p112 = por %p110, %p111
      %p114 = scmp.ne.s32.totalorder %s97, %s113
      %p115 = scmp.eq.s32.totalorder %s23, 0
      %p116 = por %p114, %p115
      %p117 = scmp.le.s32.totalorder 1, %s17
      %p118 = scmp.lt.s32.totalorder %s17, 5
      %p119 = pnand %p117, %p118
      %p120 = pneg %p119
      // Predicated region
      $region9: #{tpu_custom_call.1} parent=5 // pred_check
        _
      $region10: #{tpu_custom_call.1} parent=5 // pred_check_branch
        %122 = sbr.rel (%p119) target = $region12
      $region11: #{tpu_custom_call.1} parent=5 // pred_region
        %s123 = ssub.s32 %s17, 1
      $region12: #{tpu_custom_call.1} parent=5 // pred_fallthru
        _
      %p124 = scmp.lt.s32.totalorder %s17, 4
      // Predicated region
      $region13: #{tpu_custom_call.1} parent=5 // pred_check
        %p125 = pneg %p124
      $region14: #{tpu_custom_call.1} parent=5 // pred_check_branch
        %127 = sbr.rel (%p125) target = $region16
      $region15: #{tpu_custom_call.1} parent=5 // pred_region
        // Predicated region
        $region17: #{tpu_custom_call.1} parent=15 // pred_check
          %p128 = pneg %p49
        $region18: #{tpu_custom_call.1} parent=15 // pred_check_branch
          %130 = sbr.rel (%p128) target = $region20
        $region19: #{tpu_custom_call.1} parent=15 // pred_region
          %s131 = sand.u32 %s39, 1
          %s132 = scalar_lea.sflag [#allocation3], %s131
          %s133 = sand.u32 %s39, 1
          %s134 = smul.addr %s133, 8
          %s135 = scalar_lea.vmem [#allocation2], %s134
          %s137 = ssub.s32 128, 128
          %138 = vsyncadd %s132, %s137
          %s139 = smul.addr %s24, 128
          %s140 = scalar_lea.hbm %s0, %s139
          %s142 = sshll.u32 %s135, 4
          %s143 = int_to_ptr.vmem [resolvable:$true] %s142
          %145 = dma.hbm_to_vmem [thread:$0]  %s140, 128, %s143, %s132
        $region20: #{tpu_custom_call.1} parent=15 // pred_fallthru
          _
        // Predicated region
        $region21: #{tpu_custom_call.1} parent=15 // pred_check
          %p146 = pneg %p75
        $region22: #{tpu_custom_call.1} parent=15 // pred_check_branch
          %148 = sbr.rel (%p146) target = $region24
        $region23: #{tpu_custom_call.1} parent=15 // pred_region
          %s149 = sand.u32 %s65, 1
          %s150 = scalar_lea.sflag [#allocation6], %s149
          %s151 = sand.u32 %s65, 1
          %s152 = smul.addr %s151, 128
          %s153 = scalar_lea.vmem [#allocation5], %s152
          %s154 = smul.u32 16, %s25
          %s156 = ssub.s32 2048, 2048
          %157 = vsyncadd %s150, %s156
          %s158 = smul.addr %s154, 128
          %s159 = scalar_lea.hbm %s1, %s158
          %s160 = sshll.u32 %s153, 4
          %s161 = int_to_ptr.vmem [resolvable:$true] %s160
          %166 = dma.hbm_to_vmem [thread:$0]  %s159, 2048, %s161, %s150, 128, 128, 8
        $region24: #{tpu_custom_call.1} parent=15 // pred_fallthru
          _
      $region16: #{tpu_custom_call.1} parent=5 // pred_fallthru
        _
      %p167 = scmp.le.s32.totalorder 1, %s17
      %p168 = scmp.lt.s32.totalorder %s17, 5
      %p169 = pnand %p167, %p168
      %p170 = pneg %p169
      // Predicated region
      $region25: #{tpu_custom_call.1} parent=5 // pred_check
        _
      $region26: #{tpu_custom_call.1} parent=5 // pred_check_branch
        %172 = sbr.rel (%p169) target = $region28
      $region27: #{tpu_custom_call.1} parent=5 // pred_region
        %s173 = ssub.s32 %s17, 1
        %s174 = sand.u32 %s42, 1
        %s175 = scalar_lea.sflag [#allocation3], %s174
        %s176 = sand.u32 %s42, 1
        %s177 = smul.addr %s176, 8
        %s178 = scalar_lea.vmem [#allocation2], %s177
        // Predicated region
        $region29: #{tpu_custom_call.1} parent=27 // pred_check
          %p179 = pneg %p55
        $region30: #{tpu_custom_call.1} parent=27 // pred_check_branch
          %181 = sbr.rel (%p179) target = $region32
        $region31: #{tpu_custom_call.1} parent=27 // pred_region
          %182 = dma.done %s175, 128
        $region32: #{tpu_custom_call.1} parent=27 // pred_fallthru
          _
        %s183 = sand.u32 %s68, 1
        %s184 = scalar_lea.sflag [#allocation6], %s183
        %s185 = sand.u32 %s68, 1
        %s186 = smul.addr %s185, 128
        %s187 = scalar_lea.vmem [#allocation5], %s186
        // Predicated region
        $region33: #{tpu_custom_call.1} parent=27 // pred_check
          %p188 = pneg %p81
        $region34: #{tpu_custom_call.1} parent=27 // pred_check_branch
          %190 = sbr.rel (%p188) target = $region36
        $region35: #{tpu_custom_call.1} parent=27 // pred_region
          %191 = dma.done %s184, 2048
        $region36: #{tpu_custom_call.1} parent=27 // pred_fallthru
          _
        %s192 = sand.u32 %s42, 1
        %s193 = scalar_lea.sflag [#allocation3], %s192
        %s194 = sand.u32 %s42, 1
        %s195 = smul.addr %s194, 8
        %s196 = scalar_lea.vmem [#allocation2], %s195
        %p197 = pneg %p55
        %p198 = pneg %p52
        %s199 = sand.u32 %s68, 1
        %s200 = scalar_lea.sflag [#allocation6], %s199
        %s201 = sand.u32 %s68, 1
        %s202 = smul.addr %s201, 128
        %s203 = scalar_lea.vmem [#allocation5], %s202
        %p204 = pneg %p81
        %p205 = pneg %p78
        %p206 = pneg %p109
        %p207 = pneg %p106
        %s208 = sand.u32 %s96, 1
        %s209 = scalar_lea.sflag [#allocation4], %s208
        %s210 = sand.u32 %s96, 1
        %s211 = smul.addr %s210, 8
        %s212 = scalar_lea.vmem [#allocation7], %s211
        %s213 = smul.u32 16, %s27
        %v214 = vld [vmem:[%s178] sm:$0xff]
        %v215 = vld [vmem:[%s187] sm:$0xff]
        %v216 = vld [vmem:[%s187 + $0x8] sm:$0xff]
        %v217 = vld [vmem:[%s187 + $0x10] sm:$0xff]
        %v218 = vld [vmem:[%s187 + $0x18] sm:$0xff]
        %v219 = vld [vmem:[%s187 + $0x20] sm:$0xff]
        %v220 = vld [vmem:[%s187 + $0x28] sm:$0xff]
        %v221 = vld [vmem:[%s187 + $0x30] sm:$0xff]
        %v222 = vld [vmem:[%s187 + $0x38] sm:$0xff]
        %v223 = vld [vmem:[%s187 + $0x40] sm:$0xff]
        %v224 = vld [vmem:[%s187 + $0x48] sm:$0xff]
        %v225 = vld [vmem:[%s187 + $0x50] sm:$0xff]
        %v226 = vld [vmem:[%s187 + $0x58] sm:$0xff]
        %v227 = vld [vmem:[%s187 + $0x60] sm:$0xff]
        %v228 = vld [vmem:[%s187 + $0x68] sm:$0xff]
        %v229 = vld [vmem:[%s187 + $0x70] sm:$0xff]
        %v230 = vld [vmem:[%s187 + $0x78] sm:$0xff]
        %v231 = vmul.f32 %v215, %v215
        %v232 = vmul.f32 %v216, %v216
        %v233 = vmul.f32 %v217, %v217
        %v234 = vmul.f32 %v218, %v218
        %v235 = vmul.f32 %v219, %v219
        %v236 = vmul.f32 %v220, %v220
        %v237 = vmul.f32 %v221, %v221
        %v238 = vmul.f32 %v222, %v222
        %v239 = vmul.f32 %v223, %v223
        %v240 = vmul.f32 %v224, %v224
        %v241 = vmul.f32 %v225, %v225
        %v242 = vmul.f32 %v226, %v226
        %v243 = vmul.f32 %v227, %v227
        %v244 = vmul.f32 %v228, %v228
        %v245 = vmul.f32 %v229, %v229
        %v246 = vmul.f32 %v230, %v230
        %247 = vadd.xlane.f32.xlu0 %v231
        %v248 = vpop.xlane.xlu0 %247
        %249 = vadd.xlane.f32.xlu0 %v232
        %v250 = vpop.xlane.xlu0 %249
        %251 = vadd.xlane.f32.xlu0 %v233
        %v252 = vpop.xlane.xlu0 %251
        %253 = vadd.xlane.f32.xlu0 %v234
        %v254 = vpop.xlane.xlu0 %253
        %255 = vadd.xlane.f32.xlu0 %v235
        %v256 = vpop.xlane.xlu0 %255
        %257 = vadd.xlane.f32.xlu0 %v236
        %v258 = vpop.xlane.xlu0 %257
        %259 = vadd.xlane.f32.xlu0 %v237
        %v260 = vpop.xlane.xlu0 %259
        %261 = vadd.xlane.f32.xlu0 %v238
        %v262 = vpop.xlane.xlu0 %261
        %263 = vadd.xlane.f32.xlu0 %v239
        %v264 = vpop.xlane.xlu0 %263
        %265 = vadd.xlane.f32.xlu0 %v240
        %v266 = vpop.xlane.xlu0 %265
        %267 = vadd.xlane.f32.xlu0 %v241
        %v268 = vpop.xlane.xlu0 %267
        %269 = vadd.xlane.f32.xlu0 %v242
        %v270 = vpop.xlane.xlu0 %269
        %271 = vadd.xlane.f32.xlu0 %v243
        %v272 = vpop.xlane.xlu0 %271
        %273 = vadd.xlane.f32.xlu0 %v244
        %v274 = vpop.xlane.xlu0 %273
        %275 = vadd.xlane.f32.xlu0 %v245
        %v276 = vpop.xlane.xlu0 %275
        %277 = vadd.xlane.f32.xlu0 %v246
        %v278 = vpop.xlane.xlu0 %277
        %v279 = vrsqrt.pop %v248
        %v280 = vmul.f32 %v248, %v279
        %vm281 = vcmp.eq.f32.partialorder %v248, inf
        %v282 = vsel %vm281, %v248, %v280
        %vm283 = vcmp.eq.f32.partialorder %v248, 0.0
        %v284 = vand.u32 %v248, 2147483648
        %v285 = vsel %vm283, %v284, %v282
        %v286 = vrsqrt.pop %v250
        %v287 = vmul.f32 %v250, %v286
        %vm288 = vcmp.eq.f32.partialorder %v250, inf
        %v289 = vsel %vm288, %v250, %v287
        %vm290 = vcmp.eq.f32.partialorder %v250, 0.0
        %v291 = vand.u32 %v250, 2147483648
        %v292 = vsel %vm290, %v291, %v289
        %v293 = vrsqrt.pop %v252
        %v294 = vmul.f32 %v252, %v293
        %vm295 = vcmp.eq.f32.partialorder %v252, inf
        %v296 = vsel %vm295, %v252, %v294
        %vm297 = vcmp.eq.f32.partialorder %v252, 0.0
        %v298 = vand.u32 %v252, 2147483648
        %v299 = vsel %vm297, %v298, %v296
        %v300 = vrsqrt.pop %v254
        %v301 = vmul.f32 %v254, %v300
        %vm302 = vcmp.eq.f32.partialorder %v254, inf
        %v303 = vsel %vm302, %v254, %v301
        %vm304 = vcmp.eq.f32.partialorder %v254, 0.0
        %v305 = vand.u32 %v254, 2147483648
        %v306 = vsel %vm304, %v305, %v303
        %v307 = vrsqrt.pop %v256
        %v308 = vmul.f32 %v256, %v307
        %vm309 = vcmp.eq.f32.partialorder %v256, inf
        %v310 = vsel %vm309, %v256, %v308
        %vm311 = vcmp.eq.f32.partialorder %v256, 0.0
        %v312 = vand.u32 %v256, 2147483648
        %v313 = vsel %vm311, %v312, %v310
        %v314 = vrsqrt.pop %v258
        %v315 = vmul.f32 %v258, %v314
        %vm316 = vcmp.eq.f32.partialorder %v258, inf
        %v317 = vsel %vm316, %v258, %v315
        %vm318 = vcmp.eq.f32.partialorder %v258, 0.0
        %v319 = vand.u32 %v258, 2147483648
        %v320 = vsel %vm318, %v319, %v317
        %v321 = vrsqrt.pop %v260
        %v322 = vmul.f32 %v260, %v321
        %vm323 = vcmp.eq.f32.partialorder %v260, inf
        %v324 = vsel %vm323, %v260, %v322
        %vm325 = vcmp.eq.f32.partialorder %v260, 0.0
        %v326 = vand.u32 %v260, 2147483648
        %v327 = vsel %vm325, %v326, %v324
        %v328 = vrsqrt.pop %v262
        %v329 = vmul.f32 %v262, %v328
        %vm330 = vcmp.eq.f32.partialorder %v262, inf
        %v331 = vsel %vm330, %v262, %v329
        %vm332 = vcmp.eq.f32.partialorder %v262, 0.0
        %v333 = vand.u32 %v262, 2147483648
        %v334 = vsel %vm332, %v333, %v331
        %v335 = vrsqrt.pop %v264
        %v336 = vmul.f32 %v264, %v335
        %vm337 = vcmp.eq.f32.partialorder %v264, inf
        %v338 = vsel %vm337, %v264, %v336
        %vm339 = vcmp.eq.f32.partialorder %v264, 0.0
        %v340 = vand.u32 %v264, 2147483648
        %v341 = vsel %vm339, %v340, %v338
        %v342 = vrsqrt.pop %v266
        %v343 = vmul.f32 %v266, %v342
        %vm344 = vcmp.eq.f32.partialorder %v266, inf
        %v345 = vsel %vm344, %v266, %v343
        %vm346 = vcmp.eq.f32.partialorder %v266, 0.0
        %v347 = vand.u32 %v266, 2147483648
        %v348 = vsel %vm346, %v347, %v345
        %v349 = vrsqrt.pop %v268
        %v350 = vmul.f32 %v268, %v349
        %vm351 = vcmp.eq.f32.partialorder %v268, inf
        %v352 = vsel %vm351, %v268, %v350
        %vm353 = vcmp.eq.f32.partialorder %v268, 0.0
        %v354 = vand.u32 %v268, 2147483648
        %v355 = vsel %vm353, %v354, %v352
        %v356 = vrsqrt.pop %v270
        %v357 = vmul.f32 %v270, %v356
        %vm358 = vcmp.eq.f32.partialorder %v270, inf
        %v359 = vsel %vm358, %v270, %v357
        %vm360 = vcmp.eq.f32.partialorder %v270, 0.0
        %v361 = vand.u32 %v270, 2147483648
        %v362 = vsel %vm360, %v361, %v359
        %v363 = vrsqrt.pop %v272
        %v364 = vmul.f32 %v272, %v363
        %vm365 = vcmp.eq.f32.partialorder %v272, inf
        %v366 = vsel %vm365, %v272, %v364
        %vm367 = vcmp.eq.f32.partialorder %v272, 0.0
        %v368 = vand.u32 %v272, 2147483648
        %v369 = vsel %vm367, %v368, %v366
        %v370 = vrsqrt.pop %v274
        %v371 = vmul.f32 %v274, %v370
        %vm372 = vcmp.eq.f32.partialorder %v274, inf
        %v373 = vsel %vm372, %v274, %v371
        %vm374 = vcmp.eq.f32.partialorder %v274, 0.0
        %v375 = vand.u32 %v274, 2147483648
        %v376 = vsel %vm374, %v375, %v373
        %v377 = vrsqrt.pop %v276
        %v378 = vmul.f32 %v276, %v377
        %vm379 = vcmp.eq.f32.partialorder %v276, inf
        %v380 = vsel %vm379, %v276, %v378
        %vm381 = vcmp.eq.f32.partialorder %v276, 0.0
        %v382 = vand.u32 %v276, 2147483648
        %v383 = vsel %vm381, %v382, %v380
        %v384 = vrsqrt.pop %v278
        %v385 = vmul.f32 %v278, %v384
        %vm386 = vcmp.eq.f32.partialorder %v278, inf
        %v387 = vsel %vm386, %v278, %v385
        %vm388 = vcmp.eq.f32.partialorder %v278, 0.0
        %v389 = vand.u32 %v278, 2147483648
        %v390 = vsel %vm388, %v389, %v387
        %v391 = vmax.f32 %v285, 1e-12
        %v392 = vmax.f32 %v292, 1e-12
        %v393 = vmax.f32 %v299, 1e-12
        %v394 = vmax.f32 %v306, 1e-12
        %v395 = vmax.f32 %v313, 1e-12
        %v396 = vmax.f32 %v320, 1e-12
        %v397 = vmax.f32 %v327, 1e-12
        %v398 = vmax.f32 %v334, 1e-12
        %v399 = vmax.f32 %v341, 1e-12
        %v400 = vmax.f32 %v348, 1e-12
        %v401 = vmax.f32 %v355, 1e-12
        %v402 = vmax.f32 %v362, 1e-12
        %v403 = vmax.f32 %v369, 1e-12
        %v404 = vmax.f32 %v376, 1e-12
        %v405 = vmax.f32 %v383, 1e-12
        %v406 = vmax.f32 %v390, 1e-12
        %v407 = vrcp.pop %v391
        %v408 = vrcp.pop %v392
        %v409 = vrcp.pop %v393
        %v410 = vrcp.pop %v394
        %v411 = vrcp.pop %v395
        %v412 = vrcp.pop %v396
        %v413 = vrcp.pop %v397
        %v414 = vrcp.pop %v398
        %v415 = vrcp.pop %v399
        %v416 = vrcp.pop %v400
        %v417 = vrcp.pop %v401
        %v418 = vrcp.pop %v402
        %v419 = vrcp.pop %v403
        %v420 = vrcp.pop %v404
        %v421 = vrcp.pop %v405
        %v422 = vrcp.pop %v406
        %423 = vmatprep.subr.mxu0 0.0
        %424 = vmatpush1.xpose.msra.mxu0 %v215
        %425 = vmatprep.subr.mxu0 0.0
        %426 = vmatpush1.xpose.msra.mxu0 %v216
        %427 = vmatprep.subr.mxu0 0.0
        %428 = vmatpush1.xpose.msra.mxu0 %v217
        %429 = vmatprep.subr.mxu0 0.0
        %430 = vmatpush1.xpose.msra.mxu0 %v218
        %431 = vmatprep.subr.mxu0 0.0
        %432 = vmatpush1.xpose.msra.mxu0 %v219
        %433 = vmatprep.subr.mxu0 0.0
        %434 = vmatpush1.xpose.msra.mxu0 %v220
        %435 = vmatprep.subr.mxu0 0.0
        %436 = vmatpush1.xpose.msra.mxu0 %v221
        %437 = vmatprep.subr.mxu0 0.0
        %438 = vmatpush1.xpose.msra.mxu0 %v222
        %439 = vmatprep.subr.mxu0 0.0
        %440 = vmatpush1.xpose.msra.mxu0 %v223
        %441 = vmatprep.subr.mxu0 0.0
        %442 = vmatpush1.xpose.msra.mxu0 %v224
        %443 = vmatprep.subr.mxu0 0.0
        %444 = vmatpush1.xpose.msra.mxu0 %v225
        %445 = vmatprep.subr.mxu0 0.0
        %446 = vmatpush1.xpose.msra.mxu0 %v226
        %447 = vmatprep.subr.mxu0 0.0
        %448 = vmatpush1.xpose.msra.mxu0 %v227
        %449 = vmatprep.subr.mxu0 0.0
        %450 = vmatpush1.xpose.msra.mxu0 %v228
        %451 = vmatprep.subr.mxu0 0.0
        %452 = vmatpush1.xpose.msra.mxu0 %v229
        %453 = vmatprep.subr.mxu0 0.0
        %454 = vmatpush1.xpose.msra.mxu0 %v230
        %455 = vmatprep.subr.mxu0 0.0
        %456 = vmatpush1.xpose.msra.mxu0 0.0
        %457 = vmatprep.subr.mxu0 0.0
        %458 = vmatpush1.xpose.msra.mxu0 0.0
        %459 = vmatprep.subr.mxu0 0.0
        %460 = vmatpush1.xpose.msra.mxu0 0.0
        %461 = vmatprep.subr.mxu0 0.0
        %462 = vmatpush1.xpose.msra.mxu0 0.0
        %463 = vmatprep.subr.mxu0 0.0
        %464 = vmatpush1.xpose.msra.mxu0 0.0
        %465 = vmatprep.subr.mxu0 0.0
        %466 = vmatpush1.xpose.msra.mxu0 0.0
        %467 = vmatprep.subr.mxu0 0.0
        %468 = vmatpush1.xpose.msra.mxu0 0.0
        %469 = vmatprep.subr.mxu0 0.0
        %470 = vmatpush1.xpose.msra.mxu0 0.0
        %471 = vmatprep.subr.mxu0 0.0
        %472 = vmatpush1.xpose.msra.mxu0 0.0
        %473 = vmatprep.subr.mxu0 0.0
        %474 = vmatpush1.xpose.msra.mxu0 0.0
        %475 = vmatprep.subr.mxu0 0.0
        %476 = vmatpush1.xpose.msra.mxu0 0.0
        %477 = vmatprep.subr.mxu0 0.0
        %478 = vmatpush1.xpose.msra.mxu0 0.0
        %479 = vmatprep.subr.mxu0 0.0
        %480 = vmatpush1.xpose.msra.mxu0 0.0
        %481 = vmatprep.subr.mxu0 0.0
        %482 = vmatpush1.xpose.msra.mxu0 0.0
        %483 = vmatprep.subr.mxu0 0.0
        %484 = vmatpush1.xpose.msra.mxu0 0.0
        %485 = vmatprep.subr.mxu0 0.0
        %486 = vmatpush1.xpose.msra.mxu0 0.0
        %487 = vmatprep.mubr.f32.mxu0 0.0
        %488 = vmatmul.mubr.f32.gmra.mrb[0].mxu0 %v214
        %v489 = vpop.f32.mrb[0].mxu0
        %v490 = vadd.f32 0.0, %v489
        %v491 = vpop.f32.mrb[0].mxu0
        %492 = vdwg.mxu0
        %v509 = vlaneseq
        %v510 = vand.u32 %v509, 127
        %v511 = vlaneseq
        %v512 = vshrl.u32 %v511, 7
        %v513 = vsub.s32 %v510, %v512
        %v514 = vrot.slane %v407, %v513
        %v515 = vadd.s32 %v510, 4294967288
        %v516 = vlaneseq
        %v517 = vshrl.u32 %v516, 7
        %v518 = vsub.s32 %v515, %v517
        %v519 = vrot.slane %v408, %v518
        %vm520 = vcmask 130112
        %v521 = vsel %vm520, %v519, %v514
        %v522 = vadd.s32 %v510, 4294967280
        %v523 = vlaneseq
        %v524 = vshrl.u32 %v523, 7
        %v525 = vsub.s32 %v522, %v524
        %v526 = vrot.slane %v409, %v525
        %vm527 = vcmask 195712
        %v528 = vsel %vm527, %v526, %v521
        %v529 = vadd.s32 %v510, 4294967272
        %v530 = vlaneseq
        %v531 = vshrl.u32 %v530, 7
        %v532 = vsub.s32 %v529, %v531
        %v533 = vrot.slane %v410, %v532
        %vm534 = vcmask 261312
        %v535 = vsel %vm534, %v533, %v528
        %v536 = vadd.s32 %v510, 4294967264
        %v537 = vlaneseq
        %v538 = vshrl.u32 %v537, 7
        %v539 = vsub.s32 %v536, %v538
        %v540 = vrot.slane %v411, %v539
        %vm541 = vcmask 326912
        %v542 = vsel %vm541, %v540, %v535
        %v543 = vadd.s32 %v510, 4294967256
        %v544 = vlaneseq
        %v545 = vshrl.u32 %v544, 7
        %v546 = vsub.s32 %v543, %v545
        %v547 = vrot.slane %v412, %v546
        %vm548 = vcmask 392512
        %v549 = vsel %vm548, %v547, %v542
        %v550 = vadd.s32 %v510, 4294967248
        %v551 = vlaneseq
        %v552 = vshrl.u32 %v551, 7
        %v553 = vsub.s32 %v550, %v552
        %v554 = vrot.slane %v413, %v553
        %vm555 = vcmask 458112
        %v556 = vsel %vm555, %v554, %v549
        %v557 = vadd.s32 %v510, 4294967240
        %v558 = vlaneseq
        %v559 = vshrl.u32 %v558, 7
        %v560 = vsub.s32 %v557, %v559
        %v561 = vrot.slane %v414, %v560
        %vm562 = vcmask 523712
        %v563 = vsel %vm562, %v561, %v556
        %v564 = vadd.s32 %v510, 4294967232
        %v565 = vlaneseq
        %v566 = vshrl.u32 %v565, 7
        %v567 = vsub.s32 %v564, %v566
        %v568 = vrot.slane %v415, %v567
        %vm569 = vcmask 589312
        %v570 = vsel %vm569, %v568, %v563
        %v571 = vadd.s32 %v510, 4294967224
        %v572 = vlaneseq
        %v573 = vshrl.u32 %v572, 7
        %v574 = vsub.s32 %v571, %v573
        %v575 = vrot.slane %v416, %v574
        %vm576 = vcmask 654912
        %v577 = vsel %vm576, %v575, %v570
        %v578 = vadd.s32 %v510, 4294967216
        %v579 = vlaneseq
        %v580 = vshrl.u32 %v579, 7
        %v581 = vsub.s32 %v578, %v580
        %v582 = vrot.slane %v417, %v581
        %vm583 = vcmask 720512
        %v584 = vsel %vm583, %v582, %v577
        %v585 = vadd.s32 %v510, 4294967208
        %v586 = vlaneseq
        %v587 = vshrl.u32 %v586, 7
        %v588 = vsub.s32 %v585, %v587
        %v589 = vrot.slane %v418, %v588
        %vm590 = vcmask 786112
        %v591 = vsel %vm590, %v589, %v584
        %v592 = vadd.s32 %v510, 4294967200
        %v593 = vlaneseq
        %v594 = vshrl.u32 %v593, 7
        %v595 = vsub.s32 %v592, %v594
        %v596 = vrot.slane %v419, %v595
        %vm597 = vcmask 851712
        %v598 = vsel %vm597, %v596, %v591
        %v599 = vadd.s32 %v510, 4294967192
        %v600 = vlaneseq
        %v601 = vshrl.u32 %v600, 7
        %v602 = vsub.s32 %v599, %v601
        %v603 = vrot.slane %v420, %v602
        %vm604 = vcmask 917312
        %v605 = vsel %vm604, %v603, %v598
        %v606 = vadd.s32 %v510, 4294967184
        %v607 = vlaneseq
        %v608 = vshrl.u32 %v607, 7
        %v609 = vsub.s32 %v606, %v608
        %v610 = vrot.slane %v421, %v609
        %vm611 = vcmask 982912
        %v612 = vsel %vm611, %v610, %v605
        %v613 = vadd.s32 %v510, 4294967176
        %v614 = vlaneseq
        %v615 = vshrl.u32 %v614, 7
        %v616 = vsub.s32 %v613, %v615
        %v617 = vrot.slane %v422, %v616
        %vm618 = vcmask 1048512
        %v619 = vsel %vm618, %v617, %v612
        %vm620 = vcmask 1042434
        %v621 = vsel %vm620, %v619, %v619
        %vm622 = vcmask 1043459
        %v623 = vsel %vm622, %v619, %v621
        %vm624 = vcmask 1044484
        %v625 = vsel %vm624, %v619, %v623
        %vm626 = vcmask 1045509
        %v627 = vsel %vm626, %v619, %v625
        %vm628 = vcmask 1046534
        %v629 = vsel %vm628, %v619, %v627
        %vm630 = vcmask 1047559
        %v631 = vsel %vm630, %v619, %v629
        %v633 = vmul.f32 %v490, %v631
        %634 = vst [vmem:[%s212] sm:$0xff] %v633
        %s635 = sand.u32 %s96, 1
        %s636 = scalar_lea.sflag [#allocation4], %s635
        %s637 = sand.u32 %s96, 1
        %s638 = smul.addr %s637, 8
        %s639 = scalar_lea.vmem [#allocation7], %s638
        // Predicated region
        $region37: #{tpu_custom_call.1} parent=27 // pred_check
          %p640 = pneg %p106
        $region38: #{tpu_custom_call.1} parent=27 // pred_check_branch
          %642 = sbr.rel (%p640) target = $region40
        $region39: #{tpu_custom_call.1} parent=27 // pred_region
          %s644 = ssub.s32 128, 128
          %645 = vsyncadd %s636, %s644
          %s646 = smul.addr %s26, 2
          %s647 = sadd.s32 %s27, %s646
          %s648 = smul.addr %s647, 128
          %s649 = scalar_lea.hbm %s2, %s648
          %s651 = sshll.u32 %s639, 4
          %s652 = int_to_ptr.vmem [resolvable:$true] %s651
          %654 = dma.vmem_to_hbm [thread:$0]  %s652, 128, %s649, %s636
        $region40: #{tpu_custom_call.1} parent=27 // pred_fallthru
          _
      $region28: #{tpu_custom_call.1} parent=5 // pred_fallthru
        _
      %p655 = scmp.le.s32.totalorder 2, %s17
      // Predicated region
      $region41: #{tpu_custom_call.1} parent=5 // pred_check
        %p656 = pneg %p655
      $region42: #{tpu_custom_call.1} parent=5 // pred_check_branch
        %658 = sbr.rel (%p656) target = $region44
      $region43: #{tpu_custom_call.1} parent=5 // pred_region
        %s659 = ssub.s32 %s17, 2
        // Predicated region
        $region45: #{tpu_custom_call.1} parent=43 // pred_check
          %p660 = pneg %p112
        $region46: #{tpu_custom_call.1} parent=43 // pred_check_branch
          %662 = sbr.rel (%p660) target = $region48
        $region47: #{tpu_custom_call.1} parent=43 // pred_region
          %s663 = sand.u32 %s97, 1
          %s664 = scalar_lea.sflag [#allocation4], %s663
          %s665 = sand.u32 %s97, 1
          %s666 = smul.addr %s665, 8
          %s667 = scalar_lea.vmem [#allocation7], %s666
          %668 = dma.done %s664, 128
        $region48: #{tpu_custom_call.1} parent=43 // pred_fallthru
          _
      $region44: #{tpu_custom_call.1} parent=5 // pred_fallthru
        _
    $region6: #{tpu_custom_call.1} parent=1 // loop_footer
      %s21 = sadd.s32 1, %s17
    $region7: #{tpu_custom_call.1} parent=1 // loop_footer_branch
      %16 = sbr.rel target = $region3
    $region8: #{tpu_custom_call.1} parent=1 // loop_exit
      _
    %669 = vsyncpa [#allocation3], 1
    %s670 = scalar_lea.sflag [#allocation3], 1
    %671 = vsyncpa %s670, 1
    %672 = vsyncpa [#allocation6], 1
    %s673 = scalar_lea.sflag [#allocation6], 1
    %674 = vsyncpa %s673, 1
    %675 = vsyncpa [#allocation4], 1
    %s676 = scalar_lea.sflag [#allocation4], 1
    %677 = vsyncpa %s676, 1

</llo_original>
